<compile_context>
chip_gen: v5e
topology: v5e:2x2
jax: 0.10.0
libtpu: 0.0.40
codegen_flags: <defaults>
</compile_context>

<pallas_src>
import functools

import jax
import jax.numpy as jnp
from jax.experimental import pallas as pl
from jax.experimental.pallas import tpu as pltpu


def _mlp(x_ref, w1_ref, b1_ref, w2_ref, b2_ref):
    """relu(x @ w1 + b1) @ w2 + b2, f32 throughout, both matmuls on the MXU."""
    h = jnp.dot(x_ref[...], w1_ref[...], preferred_element_type=jnp.float32)
    h = jnp.maximum(h + b1_ref[...], 0.0)
    return jnp.dot(h, w2_ref[...], preferred_element_type=jnp.float32) + b2_ref[...]


def dqn_forward_kernel(x_ref, w1_ref, b1_ref, w2_ref, b2_ref, q_ref):
    # x_ref: (TB, 4)  w1_ref: (4, H)  b1_ref: (1, H)  w2_ref: (H, A)
    # b2_ref: (1, A)  q_ref: (TB, A)
    q_ref[...] = _mlp(x_ref, w1_ref, b1_ref, w2_ref, b2_ref).astype(q_ref.dtype)


def dqn_act_kernel(x_ref, w1_ref, b1_ref, w2_ref, b2_ref, a_ref):
    # Same MLP, but only the per-row greedy action (first-occurrence argmax
    # over the action axis) leaves the kernel. Float lane-reductions are used
    # (safest Mosaic lowering path); index cast to int32 at the end.
    q = _mlp(x_ref, w1_ref, b1_ref, w2_ref, b2_ref)
    q_max = jnp.max(q, axis=-1, keepdims=True)
    idx = jax.lax.broadcasted_iota(jnp.float32, q.shape, 1)
    first = jnp.min(jnp.where(q == q_max, idx, jnp.float32(q.shape[1])),
                    axis=-1, keepdims=True)
    a_ref[...] = first.astype(jnp.int32)


def _round_up(n, m):
    return m * pl.cdiv(n, m)


def _batch_tile(batch, block_b):
    if batch <= 8:
        return batch  # single full-extent tile; no 8-sublane constraint, no padding
    # >=2 grid steps so v7x's two TensorCores both get work; cap at block_b rows,
    # rounded to a multiple of 8 sublanes.
    return min(_round_up(block_b, 8), _round_up(pl.cdiv(batch, 2), 8))


def _dqn_call(kernel, out_cols, out_dtype, x, w1, b1, w2, b2, block_b):
    B, in_features = x.shape
    hidden = w1.shape[1]
    n_actions = w2.shape[1]

    tb = _batch_tile(B, block_b)
    b_pad = tb * pl.cdiv(B, tb)
    # Row padding only happens on the multi-tile path with a ragged final tile
    # (n_actions-wide, so the extra traffic is tiny); act()-sized batches and
    # divisible training batches take the no-pad / no-slice path.
    x_p = x if b_pad == B else jnp.pad(x, ((0, b_pad - B), (0, 0)))

    cost = pl.CostEstimate(
        flops=2 * b_pad * (in_features * hidden + hidden * n_actions),
        transcendentals=0,
        bytes_accessed=4 * (x_p.size + w1.size + b1.size + w2.size + b2.size
                            + b_pad * out_cols),
    )

    out = pl.pallas_call(
        kernel,
        out_shape=jax.ShapeDtypeStruct((b_pad, out_cols), out_dtype),
        grid=(b_pad // tb,),
        in_specs=[
            pl.BlockSpec((tb, in_features), lambda i: (i, 0)),       # x: batch-blocked
            pl.BlockSpec((in_features, hidden), lambda i: (0, 0)),   # w1: VMEM-resident
            pl.BlockSpec((1, hidden), lambda i: (0, 0)),             # b1: VMEM-resident
            pl.BlockSpec((hidden, n_actions), lambda i: (0, 0)),     # w2: VMEM-resident
            pl.BlockSpec((1, n_actions), lambda i: (0, 0)),          # b2: VMEM-resident
        ],
        out_specs=pl.BlockSpec((tb, out_cols), lambda i: (i, 0)),
        compiler_params=pltpu.CompilerParams(
            dimension_semantics=("parallel",)),
        cost_estimate=cost,
    )(x_p, w1, b1, w2, b2)

    return out if b_pad == B else out[:B]


@functools.partial(jax.jit, static_argnames=("block_b",))
def dqn_forward(x, w1, b1, w2, b2, *, block_b=1024):
    """x: (B, 4) f32 -> Q-values (B, n_actions) f32."""
    return _dqn_call(dqn_forward_kernel, w2.shape[1], jnp.float32,
                     x, w1, b1, w2, b2, block_b)


@functools.partial(jax.jit, static_argnames=("block_b",))
def dqn_greedy_action(x, w1, b1, w2, b2, *, block_b=1024):
    """Fused act() greedy branch: (B, 1) int32 actions; Q-values stay in VMEM."""
    # TODO(synk): epsilon-greedy exploration and epsilon annealing are host-side
    # Python RNG + mutable state in the original act(); they stay outside the kernel.
    return _dqn_call(dqn_act_kernel, 1, jnp.int32, x, w1, b1, w2, b2, block_b)


def make_params(key, n_actions=2, hidden=256, in_features=4):
    """Deterministic init mirroring nn.Linear shapes (weights as (in, out))."""
    k1, k2, k3, k4 = jax.random.split(key, 4)
    bound1 = 1.0 / jnp.sqrt(in_features)
    bound2 = 1.0 / jnp.sqrt(hidden)
    w1 = jax.random.uniform(k1, (in_features, hidden), jnp.float32, -bound1, bound1)
    b1 = jax.random.uniform(k2, (1, hidden), jnp.float32, -bound1, bound1)
    w2 = jax.random.uniform(k3, (hidden, n_actions), jnp.float32, -bound2, bound2)
    b2 = jax.random.uniform(k4, (1, n_actions), jnp.float32, -bound2, bound2)
    return w1, b1, w2, b2


def reference(x, w1, b1, w2, b2):
    return jnp.maximum(x @ w1 + b1, 0.0) @ w2 + b2


if __name__ == "__main__":
    key = jax.random.PRNGKey(0)
    k_params, k_small, k_big = jax.random.split(key, 3)

    n_actions = 2  # env_config['n_actions'] for CartPole
    w1, b1, w2, b2 = make_params(k_params, n_actions=n_actions)

    # Per-step act()-sized batch: single full-extent tile, no padding anywhere.
    x_small = jax.random.normal(k_small, (2, 4), jnp.float32)
    q_small = dqn_forward(x_small, w1, b1, w2, b2)
    jax.block_until_ready(q_small)
    ref_small = reference(x_small, w1, b1, w2, b2)
    assert q_small.shape == (2, n_actions)
    assert jnp.allclose(q_small, ref_small, atol=1e-4, rtol=1e-4)

    # Training-sized batch: exercises the multi-step grid (2 tiles of 56 rows)
    # plus the ragged-final-tile pad/slice path.
    x_big = jax.random.normal(k_big, (100, 4), jnp.float32)
    q_big = dqn_forward(x_big, w1, b1, w2, b2)
    jax.block_until_ready(q_big)
    ref_big = reference(x_big, w1, b1, w2, b2)
    assert q_big.shape == (100, n_actions)
    assert jnp.allclose(q_big, ref_big, atol=1e-4, rtol=1e-4)

    # Fused greedy-action path (act()): only int32 actions leave the kernel.
    a_small = dqn_greedy_action(x_small, w1, b1, w2, b2)
    jax.block_until_ready(a_small)
    assert a_small.shape == (2, 1)
    assert jnp.array_equal(a_small[:, 0],
                           jnp.argmax(q_small, axis=1).astype(jnp.int32))

    a_big = dqn_greedy_action(x_big, w1, b1, w2, b2)
    jax.block_until_ready(a_big)
    assert a_big.shape == (100, 1)
    assert jnp.array_equal(a_big[:, 0],
                           jnp.argmax(q_big, axis=1).astype(jnp.int32))

    print("KERNEL_OK")
</pallas_src>

<mosaic_0001>
module attributes {stable_mosaic.version = 11 : i64} {
  func.func @dqn_forward_kernel(%arg0: i32, %arg1: memref<2x4xf32, #tpu.memory_space<vmem>>, %arg2: memref<4x256xf32, #tpu.memory_space<vmem>>, %arg3: memref<1x256xf32, #tpu.memory_space<vmem>>, %arg4: memref<256x2xf32, #tpu.memory_space<vmem>>, %arg5: memref<1x2xf32, #tpu.memory_space<vmem>>, %arg6: memref<2x2xf32, #tpu.memory_space<vmem>>) attributes {dimension_semantics = [#tpu.dimension_semantics<parallel>], iteration_bounds = array<i64: 1>, scalar_prefetch = 0 : i64, scratch_operands = 0 : i64, tpu.core_type = #tpu.core_type<tc>, window_params = [{transform_indices = @transform_0, window_bounds = array<i64: 2, 4>}, {pipeline_mode = #tpu.pipeline_mode<synchronous>, transform_indices = @transform_1, window_bounds = array<i64: 4, 256>}, {pipeline_mode = #tpu.pipeline_mode<synchronous>, transform_indices = @transform_2, window_bounds = array<i64: 1, 256>}, {pipeline_mode = #tpu.pipeline_mode<synchronous>, transform_indices = @transform_3, window_bounds = array<i64: 256, 2>}, {pipeline_mode = #tpu.pipeline_mode<synchronous>, transform_indices = @transform_4, window_bounds = array<i64: 1, 2>}, {transform_indices = @transform_5, window_bounds = array<i64: 2, 2>}]} {
    %c0 = arith.constant 0 : index
    %c0_0 = arith.constant 0 : index
    %0 = vector.load %arg1[%c0, %c0_0] : memref<2x4xf32, #tpu.memory_space<vmem>>, vector<2x4xf32>
    %c0_1 = arith.constant 0 : index
    %c0_2 = arith.constant 0 : index
    %1 = vector.load %arg2[%c0_1, %c0_2] : memref<4x256xf32, #tpu.memory_space<vmem>>, vector<4x256xf32>
    %cst = arith.constant dense<0.000000e+00> : vector<2x256xf32>
    %2 = tpu.matmul %0, %1, %cst {dimension_numbers = #tpu.dot_dimension_numbers<[1], [0], [0], [1], [0, 0, 1, 1], [], []>} : vector<2x4xf32>, vector<4x256xf32>, vector<2x256xf32> -> vector<2x256xf32>
    %c0_3 = arith.constant 0 : index
    %c0_4 = arith.constant 0 : index
    %3 = vector.load %arg3[%c0_3, %c0_4] : memref<1x256xf32, #tpu.memory_space<vmem>>, vector<1x256xf32>
    %4 = vector.broadcast %3 : vector<1x256xf32> to vector<2x256xf32>
    %5 = arith.addf %2, %4 : vector<2x256xf32>
    %cst_5 = arith.constant 0.000000e+00 : f32
    %6 = vector.broadcast %cst_5 : f32 to vector<2x256xf32>
    %7 = arith.maximumf %5, %6 : vector<2x256xf32>
    %c0_6 = arith.constant 0 : index
    %c0_7 = arith.constant 0 : index
    %8 = vector.load %arg4[%c0_6, %c0_7] : memref<256x2xf32, #tpu.memory_space<vmem>>, vector<256x2xf32>
    %cst_8 = arith.constant dense<0.000000e+00> : vector<2x2xf32>
    %9 = tpu.matmul %7, %8, %cst_8 {dimension_numbers = #tpu.dot_dimension_numbers<[1], [0], [0], [1], [0, 0, 1, 1], [], []>} : vector<2x256xf32>, vector<256x2xf32>, vector<2x2xf32> -> vector<2x2xf32>
    %c0_9 = arith.constant 0 : index
    %c0_10 = arith.constant 0 : index
    %10 = vector.load %arg5[%c0_9, %c0_10] : memref<1x2xf32, #tpu.memory_space<vmem>>, vector<1x2xf32>
    %11 = vector.broadcast %10 : vector<1x2xf32> to vector<2x2xf32>
    %12 = arith.addf %9, %11 : vector<2x2xf32>
    %c0_11 = arith.constant 0 : index
    %c0_12 = arith.constant 0 : index
    %13 = vector.load %arg6[%c0_11, %c0_12] : memref<2x2xf32, #tpu.memory_space<vmem>>, vector<2x2xf32>
    tpu.vector_store %arg6[%c0_11, %c0_12], %12 {strides = array<i32>} : memref<2x2xf32, #tpu.memory_space<vmem>>, vector<2x2xf32>,
    return
  }
  func.func @transform_0(%arg0: i32) -> (i32, i32) {
    %c0_i32 = arith.constant 0 : i32
    %c0_i32_0 = arith.constant 0 : i32
    return %arg0, %c0_i32 : i32, i32
  }
  func.func @transform_1(%arg0: i32) -> (i32, i32) {
    %c0_i32 = arith.constant 0 : i32
    %c0_i32_0 = arith.constant 0 : i32
    %c0_i32_1 = arith.constant 0 : i32
    return %c0_i32, %c0_i32_0 : i32, i32
  }
  func.func @transform_2(%arg0: i32) -> (i32, i32) {
    %c0_i32 = arith.constant 0 : i32
    %c0_i32_0 = arith.constant 0 : i32
    %c0_i32_1 = arith.constant 0 : i32
    return %c0_i32, %c0_i32_0 : i32, i32
  }
  func.func @transform_3(%arg0: i32) -> (i32, i32) {
    %c0_i32 = arith.constant 0 : i32
    %c0_i32_0 = arith.constant 0 : i32
    %c0_i32_1 = arith.constant 0 : i32
    return %c0_i32, %c0_i32_0 : i32, i32
  }
  func.func @transform_4(%arg0: i32) -> (i32, i32) {
    %c0_i32 = arith.constant 0 : i32
    %c0_i32_0 = arith.constant 0 : i32
    %c0_i32_1 = arith.constant 0 : i32
    return %c0_i32, %c0_i32_0 : i32, i32
  }
  func.func @transform_5(%arg0: i32) -> (i32, i32) {
    %c0_i32 = arith.constant 0 : i32
    %c0_i32_0 = arith.constant 0 : i32
    return %arg0, %c0_i32 : i32, i32
  }
}

</mosaic_0001>

<llo_original>
// kernel: dqn_forward.1
$region0: #{dqn_forward.1}
  #allocation0 [shape = 'u32[]', space=smem, size = 0x4, offset = 0x4, fixed_abs, tag = 'smem constant byte address 0x4 - core index']
  #allocation1 [shape = 'u32[72,128]{1,0:T(1,128)}', space=vmem, size = 0x9000, scoped, tag = 'internal scratch']
  %s0 = inlined_call_operand.vmem [shape: f32[2,4], index: 0, kind: input, shape index: {}]
  %s1 = inlined_call_operand.vmem [shape: f32[4,256], index: 1, kind: input, shape index: {}]
  %s2 = inlined_call_operand.vmem [shape: f32[1,256], index: 2, kind: input, shape index: {}]
  %s3 = inlined_call_operand.vmem [shape: f32[256,2], index: 3, kind: input, shape index: {}]
  %s4 = inlined_call_operand.vmem [shape: f32[1,2], index: 4, kind: input, shape index: {}]
  %s5 = inlined_call_operand.hbm [shape: f32[2,2], index: 5, kind: output, shape index: {}]
  %s6 = sld [smem:[#allocation0]]
  $region30: #{dqn_forward.1} parent=0
    _
  %s8 = ssub.s32 1, %s6
  %s9 = scalar_select 0, %s8, %s6
  $region1: #{dqn_forward.1} parent=0
    #allocation2 [shape = 'u8[1024]{0}', space=vmem, size = 0x400, scoped, tag = 'output window, operand 0, single buffered']
    #allocation3 [shape = 's32[1]{0}', space=sflag, size = 0x4, scoped, tag = 'scoped memory for dqn_forward.1']
    %10 = vsyncpa [#allocation3], 0
    // Predicated region
    $region2: #{dqn_forward.1} parent=1 // pred_check
      _
    $region3: #{dqn_forward.1} parent=1 // pred_check_branch
      %12 = sbr.rel (0) target = $region5
    $region4: #{dqn_forward.1} parent=1 // pred_region
      _
    $region5: #{dqn_forward.1} parent=1 // pred_fallthru
      _
    // Predicated region
    $region6: #{dqn_forward.1} parent=1 // pred_check
      _
    $region7: #{dqn_forward.1} parent=1 // pred_check_branch
      %14 = sbr.rel (0) target = $region9
    $region8: #{dqn_forward.1} parent=1 // pred_region
      _
    $region9: #{dqn_forward.1} parent=1 // pred_fallthru
      _
    // Predicated region
    $region10: #{dqn_forward.1} parent=1 // pred_check
      _
    $region11: #{dqn_forward.1} parent=1 // pred_check_branch
      %16 = sbr.rel (0) target = $region13
    $region12: #{dqn_forward.1} parent=1 // pred_region
      _
    $region13: #{dqn_forward.1} parent=1 // pred_fallthru
      _
    // Predicated region
    $region14: #{dqn_forward.1} parent=1 // pred_check
      _
    $region15: #{dqn_forward.1} parent=1 // pred_check_branch
      %18 = sbr.rel (0) target = $region17
    $region16: #{dqn_forward.1} parent=1 // pred_region
      _
    $region17: #{dqn_forward.1} parent=1 // pred_fallthru
      _
    // Predicated region
    $region18: #{dqn_forward.1} parent=1 // pred_check
      _
    $region19: #{dqn_forward.1} parent=1 // pred_check_branch
      %20 = sbr.rel (0) target = $region21
    $region20: #{dqn_forward.1} parent=1 // pred_region
      _
    $region21: #{dqn_forward.1} parent=1 // pred_fallthru
      _
    %v21 = vld [vmem:[%s0] sm:$0x3]
    %v22 = vld [vmem:[%s1] sm:$0xff]
    %v23 = vld [vmem:[%s2] sm:$0x3]
    %v25 = vperm.slane %v23, 0
    %v26 = vperm.slane %v23, 1
    %30 = vst [vmem:[#allocation1] ss:$2 sm:$0xff] %v22
    %v31 = vld.sshfl [vmem:[#allocation1] sm:$0xff pattern:$0x75316420]
    %v32 = vld.sshfl [vmem:[#allocation1 + $0x8] sm:$0xff pattern:$0x75316420]
    %vm33 = vcmask 31744
    %v35 = vsel %vm33, %v21, 0
    %vm37 = vcmask 1043456
    %v38 = vsel %vm37, %v31, 0
    %v40 = vsel %vm37, %v32, 0
    %42 = vmatpush.msra.mxu0 0.0
    %43 = vmatpush.msra.mxu0 0.0
    %44 = vmatpush.msra.mxu0 0.0
    %45 = vmatpush.msra.mxu0 0.0
    %46 = vmatpush.msra.mxu0 0.0
    %47 = vmatpush.msra.mxu0 0.0
    %48 = vmatpush.msra.mxu0 0.0
    %49 = vmatpush.msra.mxu0 0.0
    %50 = vmatpush.msra.mxu0 0.0
    %51 = vmatpush.msra.mxu0 0.0
    %52 = vmatpush.msra.mxu0 0.0
    %53 = vmatpush.msra.mxu0 0.0
    %54 = vmatpush.msra.mxu0 0.0
    %55 = vmatpush.msra.mxu0 0.0
    %56 = vmatpush.msra.mxu0 0.0
    %57 = vmatpush.msra.mxu0 %v38
    %58 = vmatmul.f32.gmra.mxu0 %v35
    %v59 = vpop.f32.mrf.mxu0
    %v60 = vadd.f32 %v25, %v59
    %61 = vdwg.mxu0
    %62 = vmatpush.msra.mxu0 0.0
    %63 = vmatpush.msra.mxu0 0.0
    %64 = vmatpush.msra.mxu0 0.0
    %65 = vmatpush.msra.mxu0 0.0
    %66 = vmatpush.msra.mxu0 0.0
    %67 = vmatpush.msra.mxu0 0.0
    %68 = vmatpush.msra.mxu0 0.0
    %69 = vmatpush.msra.mxu0 0.0
    %70 = vmatpush.msra.mxu0 0.0
    %71 = vmatpush.msra.mxu0 0.0
    %72 = vmatpush.msra.mxu0 0.0
    %73 = vmatpush.msra.mxu0 0.0
    %74 = vmatpush.msra.mxu0 0.0
    %75 = vmatpush.msra.mxu0 0.0
    %76 = vmatpush.msra.mxu0 0.0
    %77 = vmatpush.msra.mxu0 %v40
    %78 = vmatmul.f32.gmra.mxu0 %v35
    %v79 = vpop.f32.mrf.mxu0
    %v80 = vadd.f32 %v26, %v79
    %81 = vdwg.mxu0
    %v82 = vmax.f32 %v60, 0.0
    %v83 = vmax.f32 %v80, 0.0
    %v84 = vld [vmem:[%s3] sm:$0xff]
    %v85 = vld [vmem:[%s3 + $0x8] sm:$0xff]
    %v86 = vld [vmem:[%s3 + $0x10] sm:$0xff]
    %v87 = vld [vmem:[%s3 + $0x18] sm:$0xff]
    %v88 = vld [vmem:[%s3 + $0x20] sm:$0xff]
    %v89 = vld [vmem:[%s3 + $0x28] sm:$0xff]
    %v90 = vld [vmem:[%s3 + $0x30] sm:$0xff]
    %v91 = vld [vmem:[%s3 + $0x38] sm:$0xff]
    %v92 = vld [vmem:[%s3 + $0x40] sm:$0xff]
    %v93 = vld [vmem:[%s3 + $0x48] sm:$0xff]
    %v94 = vld [vmem:[%s3 + $0x50] sm:$0xff]
    %v95 = vld [vmem:[%s3 + $0x58] sm:$0xff]
    %v96 = vld [vmem:[%s3 + $0x60] sm:$0xff]
    %v97 = vld [vmem:[%s3 + $0x68] sm:$0xff]
    %v98 = vld [vmem:[%s3 + $0x70] sm:$0xff]
    %v99 = vld [vmem:[%s3 + $0x78] sm:$0xff]
    %v100 = vld [vmem:[%s3 + $0x80] sm:$0xff]
    %v101 = vld [vmem:[%s3 + $0x88] sm:$0xff]
    %v102 = vld [vmem:[%s3 + $0x90] sm:$0xff]
    %v103 = vld [vmem:[%s3 + $0x98] sm:$0xff]
    %v104 = vld [vmem:[%s3 + $0xa0] sm:$0xff]
    %v105 = vld [vmem:[%s3 + $0xa8] sm:$0xff]
    %v106 = vld [vmem:[%s3 + $0xb0] sm:$0xff]
    %v107 = vld [vmem:[%s3 + $0xb8] sm:$0xff]
    %v108 = vld [vmem:[%s3 + $0xc0] sm:$0xff]
    %v109 = vld [vmem:[%s3 + $0xc8] sm:$0xff]
    %v110 = vld [vmem:[%s3 + $0xd0] sm:$0xff]
    %v111 = vld [vmem:[%s3 + $0xd8] sm:$0xff]
    %v112 = vld [vmem:[%s3 + $0xe0] sm:$0xff]
    %v113 = vld [vmem:[%s3 + $0xe8] sm:$0xff]
    %v114 = vld [vmem:[%s3 + $0xf0] sm:$0xff]
    %v115 = vld [vmem:[%s3 + $0xf8] sm:$0xff]
    %v116 = vld [vmem:[%s4] sm:$0x1]
    %v118 = vperm.slane %v116, 0
    %120 = vmatpush.msra.mxu0 %v99
    %121 = vmatpush.msra.mxu0 %v98
    %122 = vmatpush.msra.mxu0 %v97
    %123 = vmatpush.msra.mxu0 %v96
    %124 = vmatpush.msra.mxu0 %v95
    %125 = vmatpush.msra.mxu0 %v94
    %126 = vmatpush.msra.mxu0 %v93
    %127 = vmatpush.msra.mxu0 %v92
    %128 = vmatpush.msra.mxu0 %v91
    %129 = vmatpush.msra.mxu0 %v90
    %130 = vmatpush.msra.mxu0 %v89
    %131 = vmatpush.msra.mxu0 %v88
    %132 = vmatpush.msra.mxu0 %v87
    %133 = vmatpush.msra.mxu0 %v86
    %134 = vmatpush.msra.mxu0 %v85
    %135 = vmatpush.msra.mxu0 %v84
    %136 = vmatmul.f32.gmra.mxu0 %v82
    %v137 = vpop.f32.mrf.mxu0
    %v138 = vadd.f32 %v118, %v137
    %139 = vdwg.mxu0
    %140 = vmatpush.msra.mxu0 %v115
    %141 = vmatpush.msra.mxu0 %v114
    %142 = vmatpush.msra.mxu0 %v113
    %143 = vmatpush.msra.mxu0 %v112
    %144 = vmatpush.msra.mxu0 %v111
    %145 = vmatpush.msra.mxu0 %v110
    %146 = vmatpush.msra.mxu0 %v109
    %147 = vmatpush.msra.mxu0 %v108
    %148 = vmatpush.msra.mxu0 %v107
    %149 = vmatpush.msra.mxu0 %v106
    %150 = vmatpush.msra.mxu0 %v105
    %151 = vmatpush.msra.mxu0 %v104
    %152 = vmatpush.msra.mxu0 %v103
    %153 = vmatpush.msra.mxu0 %v102
    %154 = vmatpush.msra.mxu0 %v101
    %155 = vmatpush.msra.mxu0 %v100
    %156 = vmatmul.f32.gmra.mxu0 %v83
    %v157 = vpop.f32.mrf.mxu0
    %v158 = vadd.f32 %v138, %v157
    %159 = vdwg.mxu0
    %vm160 = vcmask 9216
    %161 = vst.msk [vmem:[#allocation2] sm:$0x3] %vm160, %v158
    // Predicated region
    $region22: #{dqn_forward.1} parent=1 // pred_check
      _
    $region23: #{dqn_forward.1} parent=1 // pred_check_branch
      %163 = sbr.rel (0) target = $region25
    $region24: #{dqn_forward.1} parent=1 // pred_region
      %165 = vsyncadd [#allocation3], 0
      %s167 = sshll.u32 [#allocation2], 4
      %s168 = int_to_ptr.vmem [resolvable:$true] %s167
      %s169 = sshll.u32 %s5, 4
      %s170 = int_to_ptr.hbm [resolvable:$true] %s169
      %172 = dma.vmem_to_hbm [thread:$0]  %s168, 32, %s170, [#allocation3]
    $region25: #{dqn_forward.1} parent=1 // pred_fallthru
      _
    // Predicated region
    $region26: #{dqn_forward.1} parent=1 // pred_check
      _
    $region27: #{dqn_forward.1} parent=1 // pred_check_branch
      %174 = sbr.rel (0) target = $region29
    $region28: #{dqn_forward.1} parent=1 // pred_region
      %176 = dma.done [#allocation3], 32
    $region29: #{dqn_forward.1} parent=1 // pred_fallthru
      _
    %177 = vsyncpa [#allocation3], 1

</llo_original>
